<compile_context>
chip_gen: v6e
topology: v6e:2x2x1
jax: 0.10.0
libtpu: 0.0.40
codegen_flags: <defaults>
</compile_context>

<pallas_src>
import functools

import jax
import jax.numpy as jnp
from jax.experimental import pallas as pl
from jax.experimental.pallas import tpu as pltpu


def _self_attention_kernel(x_ref, wqkv_ref, bqkv_ref, wo_ref, bo_ref, out_ref,
                           *, nhead, d_head, seq_len, approx_recip):
    H, D, S = nhead, d_head, seq_len
    HD = H * D
    rows, _ = x_ref.shape            # rows = block_b * S
    Bb = rows // S
    cdt = wqkv_ref.dtype             # MXU operand dtype (bf16 perf path / f32 exact path)

    # Fused QKV projection: one lane-dense MXU matmul (f32 accumulation) + one
    # wide bias add.  Column layout of wqkv is [Q heads | K heads | V heads],
    # head-major, with 1/sqrt(D) already folded into the Q columns + bias.
    x2 = x_ref[...].astype(cdt)                                   # (rows, I)
    qkv = jnp.dot(x2, wqkv_ref[...],
                  preferred_element_type=jnp.float32) + bqkv_ref[...]   # (rows, 3*H*D) f32

    # Per-head attention (H is small; static unroll).  Softmax stays f32 (VPU/EUP).
    ctx_heads = []
    for h in range(H):
        q = qkv[:, h * D:(h + 1) * D].reshape(Bb, S, D)
        k = qkv[:, HD + h * D:HD + (h + 1) * D].reshape(Bb, S, D)
        v = qkv[:, 2 * HD + h * D:2 * HD + (h + 1) * D].reshape(Bb, S, D)

        # Scores via batched dot_general contracting over D (no explicit transpose);
        # scale already folded into q.
        s = jnp.einsum('bqd,bkd->bqk', q.astype(cdt), k.astype(cdt),
                       preferred_element_type=jnp.float32)        # (Bb, S, S) f32
        s = s - jnp.max(s, axis=-1, keepdims=True)
        p = jnp.exp(s)
        p = p * pl.reciprocal(jnp.sum(p, axis=-1, keepdims=True), approx=approx_recip)

        ctx = jnp.einsum('bqk,bkd->bqd', p.astype(cdt), v.astype(cdt),
                         preferred_element_type=jnp.float32)      # (Bb, S, D) f32
        ctx_heads.append(ctx.reshape(rows, D))

    # head_reduction (concat) + output_module fused into ONE matmul with K = H*D,
    # writing a lane-dense (rows, O_pad) slab.
    ctx_all = jnp.concatenate(ctx_heads, axis=-1)                 # (rows, H*D) f32
    out = jnp.dot(ctx_all.astype(cdt), wo_ref[...],
                  preferred_element_type=jnp.float32) + bo_ref[...]
    out_ref[...] = out.astype(out_ref.dtype)


def prepare_params(wq, bq, wk, bk, wv, bv, wo, bo, *, use_bf16=True, lane_pad=128):
    """One-time weight packing (hoisted out of the per-call path).

    Returns a dict of packed, device-ready parameters for `self_attention`.
    """
    H, I, D = wq.shape
    O = wo.shape[-1]
    scale = jnp.float32(1.0) / jnp.sqrt(jnp.float32(D))

    # Fold the softmax scale into the Q weights and bias (removes the per-head
    # (B,S,S) multiply in the kernel at zero cost here).
    wq_s = (wq.astype(jnp.float32) * scale)
    bq_s = (bq.astype(jnp.float32) * scale)

    # Fused QKV weight (I, 3*H*D); column blocks [Q | K | V], head-major inside.
    w_qkv = jnp.concatenate(
        [wq_s.transpose(1, 0, 2).reshape(I, H * D),
         wk.astype(jnp.float32).transpose(1, 0, 2).reshape(I, H * D),
         wv.astype(jnp.float32).transpose(1, 0, 2).reshape(I, H * D)], axis=-1)
    b_qkv = jnp.concatenate(
        [bq_s.reshape(H * D),
         bk.astype(jnp.float32).reshape(H * D),
         bv.astype(jnp.float32).reshape(H * D)]).reshape(1, 3 * H * D)

    # Output projection, columns zero-padded to a lane-dense multiple of 128 so
    # the kernel's final store is an unmasked vst (wrapper slices afterwards).
    O_pad = ((O + lane_pad - 1) // lane_pad) * lane_pad
    wo_p = jnp.zeros((H * D, O_pad), jnp.float32).at[:, :O].set(wo.astype(jnp.float32))
    bo_p = jnp.zeros((1, O_pad), jnp.float32).at[:, :O].set(bo.astype(jnp.float32).reshape(1, O))

    cdt = jnp.bfloat16 if use_bf16 else jnp.float32
    return dict(
        w_qkv=w_qkv.astype(cdt),     # MXU operand dtype
        b_qkv=b_qkv,                 # biases stay f32 (added post-accumulation)
        wo=wo_p.astype(cdt),
        bo=bo_p,
        nhead=H, d_head=D, in_features=I, out_features=O, out_pad=O_pad,
    )


def self_attention(x, params, *, approx_recip=True, block_b=None):
    """x: (B, S, I) -> (B, S, O), using pre-packed `params` from prepare_params."""
    B, S, I = x.shape
    H, D = params['nhead'], params['d_head']
    O, O_pad = params['out_features'], params['out_pad']
    HD3 = 3 * H * D
    assert I == params['in_features']

    if block_b is None:
        # Single fat grid step at tiny shapes (v5e/v6e: 1 TC, ~0.35us per extra
        # step).  If B*S grows, target ~512 rows per step.  On v7x pass
        # block_b = B // 2 explicitly so both TensorCores get work.
        block_b = B
        if B * S > 512:
            block_b = max(1, 512 // S)
            while B % block_b:
                block_b -= 1
    assert B % block_b == 0
    rows = block_b * S

    # Wrapper-side layout plumbing: present the kernel with 2-D slabs.
    x2 = x.reshape(B * S, I)

    flops = (2 * B * S * I * HD3            # fused QKV projection
             + 4 * B * H * S * S * D        # scores + context
             + 2 * B * S * H * D * O_pad)   # output projection
    bytes_accessed = (x2.size * x2.dtype.itemsize
                      + params['w_qkv'].size * params['w_qkv'].dtype.itemsize
                      + params['wo'].size * params['wo'].dtype.itemsize
                      + params['b_qkv'].size * 4 + params['bo'].size * 4
                      + B * S * O_pad * x.dtype.itemsize)
    cost = pl.CostEstimate(flops=flops, transcendentals=B * H * S * S,
                           bytes_accessed=bytes_accessed)

    kernel = functools.partial(_self_attention_kernel, nhead=H, d_head=D,
                               seq_len=S, approx_recip=approx_recip)

    out2 = pl.pallas_call(
        kernel,
        out_shape=jax.ShapeDtypeStruct((B * S, O_pad), x.dtype),
        grid_spec=pltpu.PrefetchScalarGridSpec(
            num_scalar_prefetch=0,
            grid=(B // block_b,),
            in_specs=[
                pl.BlockSpec((rows, I), lambda b: (b, 0)),        # x (2-D slab)
                pl.BlockSpec((I, HD3), lambda b: (0, 0)),         # fused QKV weight
                pl.BlockSpec((1, HD3), lambda b: (0, 0)),         # fused QKV bias (f32)
                pl.BlockSpec((H * D, O_pad), lambda b: (0, 0)),   # output weight (lane-padded)
                pl.BlockSpec((1, O_pad), lambda b: (0, 0)),       # output bias (f32)
            ],
            out_specs=pl.BlockSpec((rows, O_pad), lambda b: (b, 0)),
        ),
        compiler_params=pltpu.CompilerParams(
            dimension_semantics=("parallel",)),
        cost_estimate=cost,
    )(x2, params['w_qkv'], params['b_qkv'], params['wo'], params['bo'])

    out2 = out2[:, :O] if O_pad != O else out2
    return out2.reshape(B, S, O)


def _reference(x, wq, bq, wk, bk, wv, bv, wo, bo):
    """Pure-JAX reference mirroring the PyTorch forward pass (f32)."""
    H, _, D = wq.shape
    heads = []
    for h in range(H):
        q = x @ wq[h] + bq[h]
        k = x @ wk[h] + bk[h]
        v = x @ wv[h] + bv[h]
        s = (q @ jnp.swapaxes(k, -1, -2)) / jnp.sqrt(jnp.float32(D))
        p = jax.nn.softmax(s, axis=-1)
        heads.append(p @ v)
    concat = jnp.concatenate(heads, axis=-1)
    return concat @ wo + bo


if __name__ == "__main__":
    # Small shapes consistent with the module's forward contract (*, S, I) -> (*, S, O)
    B, S, I = 2, 8, 32      # batch, seq, input_features
    H, D = 2, 16            # nhead, per-head q/k/v features
    O = 32                  # output_features

    key = jax.random.PRNGKey(0)
    ks = jax.random.split(key, 9)
    scale_in = 1.0 / jnp.sqrt(jnp.float32(I))
    scale_hd = 1.0 / jnp.sqrt(jnp.float32(H * D))

    x  = jax.random.normal(ks[0], (B, S, I), dtype=jnp.float32)
    wq = jax.random.normal(ks[1], (H, I, D), dtype=jnp.float32) * scale_in
    wk = jax.random.normal(ks[2], (H, I, D), dtype=jnp.float32) * scale_in
    wv = jax.random.normal(ks[3], (H, I, D), dtype=jnp.float32) * scale_in
    bq = jax.random.normal(ks[4], (H, D), dtype=jnp.float32) * 0.02
    bk = jax.random.normal(ks[5], (H, D), dtype=jnp.float32) * 0.02
    bv = jax.random.normal(ks[6], (H, D), dtype=jnp.float32) * 0.02
    wo = jax.random.normal(ks[7], (H * D, O), dtype=jnp.float32) * scale_hd
    bo = jax.random.normal(ks[8], (O,), dtype=jnp.float32) * 0.02

    ref = _reference(x, wq, bq, wk, bk, wv, bv, wo, bo)

    # --- exact path (f32 MXU operands, exact reciprocal): tight correctness check
    params_exact = prepare_params(wq, bq, wk, bk, wv, bv, wo, bo, use_bf16=False)
    params_exact = jax.tree_util.tree_map(jax.block_until_ready, params_exact)  # one-time prep
    out_exact = self_attention(x, params_exact, approx_recip=False)
    out_exact = jax.block_until_ready(out_exact)
    assert out_exact.shape == (B, S, O)
    assert jnp.allclose(out_exact, ref, atol=1e-4, rtol=1e-4), "mismatch vs reference (f32 path)"

    # --- performance path (bf16 MXU operands + approx reciprocal, f32 accumulation)
    params_perf = prepare_params(wq, bq, wk, bk, wv, bv, wo, bo, use_bf16=True)
    params_perf = jax.tree_util.tree_map(jax.block_until_ready, params_perf)    # one-time prep
    out_perf = self_attention(x, params_perf, approx_recip=True)
    out_perf = jax.block_until_ready(out_perf)
    assert out_perf.shape == (B, S, O)
    assert jnp.allclose(out_perf, ref, atol=1e-1, rtol=1e-1), "mismatch vs reference (bf16 path)"

    print("KERNEL_OK")
</pallas_src>

<mosaic_0001>
module attributes {stable_mosaic.version = 11 : i64} {
  func.func @_self_attention_kernel(%arg0: i32, %arg1: memref<16x32xf32, #tpu.memory_space<vmem>>, %arg2: memref<32x96xf32, #tpu.memory_space<vmem>>, %arg3: memref<1x96xf32, #tpu.memory_space<vmem>>, %arg4: memref<32x128xf32, #tpu.memory_space<vmem>>, %arg5: memref<1x128xf32, #tpu.memory_space<vmem>>, %arg6: memref<16x128xf32, #tpu.memory_space<vmem>>) attributes {dimension_semantics = [#tpu.dimension_semantics<parallel>], iteration_bounds = array<i64: 1>, scalar_prefetch = 0 : i64, scratch_operands = 0 : i64, tpu.core_type = #tpu.core_type<tc>, window_params = [{transform_indices = @transform_0, window_bounds = array<i64: 16, 32>}, {pipeline_mode = #tpu.pipeline_mode<synchronous>, transform_indices = @transform_1, window_bounds = array<i64: 32, 96>}, {pipeline_mode = #tpu.pipeline_mode<synchronous>, transform_indices = @transform_2, window_bounds = array<i64: 1, 96>}, {pipeline_mode = #tpu.pipeline_mode<synchronous>, transform_indices = @transform_3, window_bounds = array<i64: 32, 128>}, {pipeline_mode = #tpu.pipeline_mode<synchronous>, transform_indices = @transform_4, window_bounds = array<i64: 1, 128>}, {transform_indices = @transform_5, window_bounds = array<i64: 16, 128>}]} {
    %c0 = arith.constant 0 : index
    %c0_0 = arith.constant 0 : index
    %0 = vector.load %arg1[%c0, %c0_0] : memref<16x32xf32, #tpu.memory_space<vmem>>, vector<16x32xf32>
    %c0_1 = arith.constant 0 : index
    %c0_2 = arith.constant 0 : index
    %1 = vector.load %arg2[%c0_1, %c0_2] : memref<32x96xf32, #tpu.memory_space<vmem>>, vector<32x96xf32>
    %cst = arith.constant dense<0.000000e+00> : vector<16x96xf32>
    %2 = tpu.matmul %0, %1, %cst {dimension_numbers = #tpu.dot_dimension_numbers<[1], [0], [0], [1], [0, 0, 1, 1], [], []>} : vector<16x32xf32>, vector<32x96xf32>, vector<16x96xf32> -> vector<16x96xf32>
    %c0_3 = arith.constant 0 : index
    %c0_4 = arith.constant 0 : index
    %3 = vector.load %arg3[%c0_3, %c0_4] : memref<1x96xf32, #tpu.memory_space<vmem>>, vector<1x96xf32>
    %4 = vector.broadcast %3 : vector<1x96xf32> to vector<16x96xf32>
    %5 = arith.addf %2, %4 : vector<16x96xf32>
    %6 = vector.extract_strided_slice %5 {offsets = [0, 0], sizes = [16, 16], strides = [1, 1]} : vector<16x96xf32> to vector<16x16xf32>
    %7 = vector.shape_cast %6 : vector<16x16xf32> to vector<2x8x16xf32>
    %8 = vector.extract_strided_slice %5 {offsets = [0, 32], sizes = [16, 16], strides = [1, 1]} : vector<16x96xf32> to vector<16x16xf32>
    %9 = vector.shape_cast %8 : vector<16x16xf32> to vector<2x8x16xf32>
    %10 = vector.extract_strided_slice %5 {offsets = [0, 64], sizes = [16, 16], strides = [1, 1]} : vector<16x96xf32> to vector<16x16xf32>
    %11 = vector.shape_cast %10 : vector<16x16xf32> to vector<2x8x16xf32>
    "tpu.trace_start"() <{level = 10 : i32, message = "bqd,bkd->bqk"}> : () -> ()
    %cst_5 = arith.constant dense<0.000000e+00> : vector<2x8x8xf32>
    %12 = tpu.matmul %7, %9, %cst_5 {dimension_numbers = #tpu.dot_dimension_numbers<[2], [2], [1], [1], [0, 0, 0, 1, 1, 1], [0], [0]>} : vector<2x8x16xf32>, vector<2x8x16xf32>, vector<2x8x8xf32> -> vector<2x8x8xf32>
    "tpu.trace_stop"() : () -> ()
    %cst_6 = arith.constant dense<0xFF800000> : vector<2x8xf32>
    %13 = vector.multi_reduction <maximumf>, %12, %cst_6 [2] : vector<2x8x8xf32> to vector<2x8xf32>
    %14 = vector.shape_cast %13 : vector<2x8xf32> to vector<2x8x1xf32>
    %15 = vector.broadcast %14 : vector<2x8x1xf32> to vector<2x8x8xf32>
    %16 = arith.subf %12, %15 : vector<2x8x8xf32>
    %17 = math.exp %16 : vector<2x8x8xf32>
    %cst_7 = arith.constant dense<0.000000e+00> : vector<2x8xf32>
    %18 = vector.multi_reduction <add>, %17, %cst_7 [2] : vector<2x8x8xf32> to vector<2x8xf32>
    %19 = vector.shape_cast %18 : vector<2x8xf32> to vector<2x8x1xf32>
    %20 = tpu.reciprocal %19 : vector<2x8x1xf32> -> vector<2x8x1xf32>
    %21 = vector.broadcast %20 : vector<2x8x1xf32> to vector<2x8x8xf32>
    %22 = arith.mulf %17, %21 : vector<2x8x8xf32>
    "tpu.trace_start"() <{level = 10 : i32, message = "bqk,bkd->bqd"}> : () -> ()
    %cst_8 = arith.constant dense<0.000000e+00> : vector<2x8x16xf32>
    %23 = tpu.matmul %22, %11, %cst_8 {dimension_numbers = #tpu.dot_dimension_numbers<[2], [1], [1], [2], [0, 0, 0, 1, 1, 2], [0], [0]>} : vector<2x8x8xf32>, vector<2x8x16xf32>, vector<2x8x16xf32> -> vector<2x8x16xf32>
    "tpu.trace_stop"() : () -> ()
    %24 = vector.shape_cast %23 : vector<2x8x16xf32> to vector<16x16xf32>
    %25 = vector.extract_strided_slice %5 {offsets = [0, 16], sizes = [16, 16], strides = [1, 1]} : vector<16x96xf32> to vector<16x16xf32>
    %26 = vector.shape_cast %25 : vector<16x16xf32> to vector<2x8x16xf32>
    %27 = vector.extract_strided_slice %5 {offsets = [0, 48], sizes = [16, 16], strides = [1, 1]} : vector<16x96xf32> to vector<16x16xf32>
    %28 = vector.shape_cast %27 : vector<16x16xf32> to vector<2x8x16xf32>
    %29 = vector.extract_strided_slice %5 {offsets = [0, 80], sizes = [16, 16], strides = [1, 1]} : vector<16x96xf32> to vector<16x16xf32>
    %30 = vector.shape_cast %29 : vector<16x16xf32> to vector<2x8x16xf32>
    "tpu.trace_start"() <{level = 10 : i32, message = "bqd,bkd->bqk"}> : () -> ()
    %cst_9 = arith.constant dense<0.000000e+00> : vector<2x8x8xf32>
    %31 = tpu.matmul %26, %28, %cst_9 {dimension_numbers = #tpu.dot_dimension_numbers<[2], [2], [1], [1], [0, 0, 0, 1, 1, 1], [0], [0]>} : vector<2x8x16xf32>, vector<2x8x16xf32>, vector<2x8x8xf32> -> vector<2x8x8xf32>
    "tpu.trace_stop"() : () -> ()
    %cst_10 = arith.constant dense<0xFF800000> : vector<2x8xf32>
    %32 = vector.multi_reduction <maximumf>, %31, %cst_10 [2] : vector<2x8x8xf32> to vector<2x8xf32>
    %33 = vector.shape_cast %32 : vector<2x8xf32> to vector<2x8x1xf32>
    %34 = vector.broadcast %33 : vector<2x8x1xf32> to vector<2x8x8xf32>
    %35 = arith.subf %31, %34 : vector<2x8x8xf32>
    %36 = math.exp %35 : vector<2x8x8xf32>
    %cst_11 = arith.constant dense<0.000000e+00> : vector<2x8xf32>
    %37 = vector.multi_reduction <add>, %36, %cst_11 [2] : vector<2x8x8xf32> to vector<2x8xf32>
    %38 = vector.shape_cast %37 : vector<2x8xf32> to vector<2x8x1xf32>
    %39 = tpu.reciprocal %38 : vector<2x8x1xf32> -> vector<2x8x1xf32>
    %40 = vector.broadcast %39 : vector<2x8x1xf32> to vector<2x8x8xf32>
    %41 = arith.mulf %36, %40 : vector<2x8x8xf32>
    "tpu.trace_start"() <{level = 10 : i32, message = "bqk,bkd->bqd"}> : () -> ()
    %cst_12 = arith.constant dense<0.000000e+00> : vector<2x8x16xf32>
    %42 = tpu.matmul %41, %30, %cst_12 {dimension_numbers = #tpu.dot_dimension_numbers<[2], [1], [1], [2], [0, 0, 0, 1, 1, 2], [0], [0]>} : vector<2x8x8xf32>, vector<2x8x16xf32>, vector<2x8x16xf32> -> vector<2x8x16xf32>
    "tpu.trace_stop"() : () -> ()
    %43 = vector.shape_cast %42 : vector<2x8x16xf32> to vector<16x16xf32>
    %44 = tpu.concatenate %24, %43 in 1 : vector<16x16xf32>, vector<16x16xf32> -> vector<16x32xf32>
    %c0_13 = arith.constant 0 : index
    %c0_14 = arith.constant 0 : index
    %45 = vector.load %arg4[%c0_13, %c0_14] : memref<32x128xf32, #tpu.memory_space<vmem>>, vector<32x128xf32>
    %cst_15 = arith.constant dense<0.000000e+00> : vector<16x128xf32>
    %46 = tpu.matmul %44, %45, %cst_15 {dimension_numbers = #tpu.dot_dimension_numbers<[1], [0], [0], [1], [0, 0, 1, 1], [], []>} : vector<16x32xf32>, vector<32x128xf32>, vector<16x128xf32> -> vector<16x128xf32>
    %c0_16 = arith.constant 0 : index
    %c0_17 = arith.constant 0 : index
    %47 = vector.load %arg5[%c0_16, %c0_17] : memref<1x128xf32, #tpu.memory_space<vmem>>, vector<1x128xf32>
    %48 = vector.broadcast %47 : vector<1x128xf32> to vector<16x128xf32>
    %49 = arith.addf %46, %48 : vector<16x128xf32>
    %c0_18 = arith.constant 0 : index
    %c0_19 = arith.constant 0 : index
    %50 = vector.load %arg6[%c0_18, %c0_19] : memref<16x128xf32, #tpu.memory_space<vmem>>, vector<16x128xf32>
    tpu.vector_store %arg6[%c0_18, %c0_19], %49 {strides = array<i32>} : memref<16x128xf32, #tpu.memory_space<vmem>>, vector<16x128xf32>,
    return
  }
  func.func @transform_0(%arg0: i32) -> (i32, i32) {
    %c0_i32 = arith.constant 0 : i32
    %c0_i32_0 = arith.constant 0 : i32
    return %arg0, %c0_i32 : i32, i32
  }
  func.func @transform_1(%arg0: i32) -> (i32, i32) {
    %c0_i32 = arith.constant 0 : i32
    %c0_i32_0 = arith.constant 0 : i32
    %c0_i32_1 = arith.constant 0 : i32
    return %c0_i32, %c0_i32_0 : i32, i32
  }
  func.func @transform_2(%arg0: i32) -> (i32, i32) {
    %c0_i32 = arith.constant 0 : i32
    %c0_i32_0 = arith.constant 0 : i32
    %c0_i32_1 = arith.constant 0 : i32
    return %c0_i32, %c0_i32_0 : i32, i32
  }
  func.func @transform_3(%arg0: i32) -> (i32, i32) {
    %c0_i32 = arith.constant 0 : i32
    %c0_i32_0 = arith.constant 0 : i32
    %c0_i32_1 = arith.constant 0 : i32
    return %c0_i32, %c0_i32_0 : i32, i32
  }
  func.func @transform_4(%arg0: i32) -> (i32, i32) {
    %c0_i32 = arith.constant 0 : i32
    %c0_i32_0 = arith.constant 0 : i32
    %c0_i32_1 = arith.constant 0 : i32
    return %c0_i32, %c0_i32_0 : i32, i32
  }
  func.func @transform_5(%arg0: i32) -> (i32, i32) {
    %c0_i32 = arith.constant 0 : i32
    %c0_i32_0 = arith.constant 0 : i32
    return %arg0, %c0_i32 : i32, i32
  }
}

</mosaic_0001>

<llo_original>
// kernel: tpu_custom_call.1
$region0: #{tpu_custom_call.1}
  #allocation0 [shape = 'u32[]', space=smem, size = 0x4, offset = 0x4, fixed_abs, tag = 'smem constant byte address 0x4 - core index']
  #allocation1 [shape = 'u32[144,128]{1,0:T(1,128)}', space=vmem, size = 0x12000, scoped, tag = 'internal scratch']
  %s0 = inlined_call_operand.hbm [shape: f32[16,32], index: 0, kind: input, shape index: {}]
  %s1 = inlined_call_operand.hbm [shape: f32[32,96], index: 1, kind: input, shape index: {}]
  %s2 = inlined_call_operand.vmem [shape: f32[1,96], index: 2, kind: input, shape index: {}]
  %s3 = inlined_call_operand.hbm [shape: f32[32,128], index: 3, kind: input, shape index: {}]
  %s4 = inlined_call_operand.vmem [shape: f32[1,128], index: 4, kind: input, shape index: {}]
  %s5 = inlined_call_operand.hbm [shape: f32[16,128], index: 5, kind: output, shape index: {}]
  %s6 = sld [smem:[#allocation0]]
  $region42: #{tpu_custom_call.1} parent=0
    _
  %s8 = ssub.s32 1, %s6
  %s9 = scalar_select 0, %s8, %s6
  $region1: #{tpu_custom_call.1} parent=0
    #allocation2 [shape = 'u8[8192]{0}', space=vmem, size = 0x2000, scoped, tag = 'input window, operand 0, single buffered']
    #allocation3 [shape = 's32[1]{0}', space=sflag, size = 0x4, scoped, tag = 'scoped memory for tpu_custom_call.1']
    #allocation4 [shape = 's32[1]{0}', space=sflag, size = 0x4, scoped, tag = 'scoped memory for tpu_custom_call.1']
    #allocation5 [shape = 'u8[16384]{0}', space=vmem, size = 0x4000, scoped, tag = 'input window, operand 1, single buffered']
    #allocation6 [shape = 's32[1]{0}', space=sflag, size = 0x4, scoped, tag = 'scoped memory for tpu_custom_call.1']
    #allocation7 [shape = 'u8[16384]{0}', space=vmem, size = 0x4000, scoped, tag = 'input window, operand 3, single buffered']
    #allocation8 [shape = 'u8[8192]{0}', space=vmem, size = 0x2000, scoped, tag = 'output window, operand 0, single buffered']
    %10 = vsyncpa [#allocation3], 0
    %11 = vsyncpa [#allocation6], 0
    %12 = vsyncpa [#allocation4], 0
    // Predicated region
    $region2: #{tpu_custom_call.1} parent=1 // pred_check
      _
    $region3: #{tpu_custom_call.1} parent=1 // pred_check_branch
      %14 = sbr.rel (0) target = $region5
    $region4: #{tpu_custom_call.1} parent=1 // pred_region
      %s16 = ssub.s32 256, 256
      %17 = vsyncadd [#allocation3], %s16
      %s18 = sshll.u32 [#allocation2], 4
      %s19 = int_to_ptr.vmem [resolvable:$true] %s18
      %24 = dma.hbm_to_vmem [thread:$0]  %s0, 256, %s19, [#allocation3], 128, 128, 8
    $region5: #{tpu_custom_call.1} parent=1 // pred_fallthru
      _
    // Predicated region
    $region6: #{tpu_custom_call.1} parent=1 // pred_check
      _
    $region7: #{tpu_custom_call.1} parent=1 // pred_check_branch
      %26 = sbr.rel (0) target = $region9
    $region8: #{tpu_custom_call.1} parent=1 // pred_region
      %s28 = ssub.s32 512, 512
      %29 = vsyncadd [#allocation6], %s28
      %s30 = sshll.u32 [#allocation5], 4
      %s31 = int_to_ptr.vmem [resolvable:$true] %s30
      %36 = dma.hbm_to_vmem [thread:$0]  %s1, 512, %s31, [#allocation6], 128, 128, 8
    $region9: #{tpu_custom_call.1} parent=1 // pred_fallthru
      _
    // Predicated region
    $region10: #{tpu_custom_call.1} parent=1 // pred_check
      _
    $region11: #{tpu_custom_call.1} parent=1 // pred_check_branch
      %38 = sbr.rel (0) target = $region13
    $region12: #{tpu_custom_call.1} parent=1 // pred_region
      _
    $region13: #{tpu_custom_call.1} parent=1 // pred_fallthru
      _
    // Predicated region
    $region14: #{tpu_custom_call.1} parent=1 // pred_check
      _
    $region15: #{tpu_custom_call.1} parent=1 // pred_check_branch
      %40 = sbr.rel (0) target = $region17
    $region16: #{tpu_custom_call.1} parent=1 // pred_region
      %s42 = ssub.s32 512, 512
      %43 = vsyncadd [#allocation6], %s42
      %s44 = sshll.u32 [#allocation7], 4
      %s45 = int_to_ptr.vmem [resolvable:$true] %s44
      %50 = dma.hbm_to_vmem [thread:$0]  %s3, 512, %s45, [#allocation6], 128, 128, 8
    $region17: #{tpu_custom_call.1} parent=1 // pred_fallthru
      _
    // Predicated region
    $region18: #{tpu_custom_call.1} parent=1 // pred_check
      _
    $region19: #{tpu_custom_call.1} parent=1 // pred_check_branch
      %52 = sbr.rel (0) target = $region21
    $region20: #{tpu_custom_call.1} parent=1 // pred_region
      _
    $region21: #{tpu_custom_call.1} parent=1 // pred_fallthru
      _
    // Predicated region
    $region22: #{tpu_custom_call.1} parent=1 // pred_check
      _
    $region23: #{tpu_custom_call.1} parent=1 // pred_check_branch
      %54 = sbr.rel (0) target = $region25
    $region24: #{tpu_custom_call.1} parent=1 // pred_region
      %55 = dma.done [#allocation3], 256
    $region25: #{tpu_custom_call.1} parent=1 // pred_fallthru
      _
    // Predicated region
    $region26: #{tpu_custom_call.1} parent=1 // pred_check
      _
    $region27: #{tpu_custom_call.1} parent=1 // pred_check_branch
      %57 = sbr.rel (0) target = $region29
    $region28: #{tpu_custom_call.1} parent=1 // pred_region
      %58 = dma.done [#allocation6], 512
    $region29: #{tpu_custom_call.1} parent=1 // pred_fallthru
      _
    // Predicated region
    $region30: #{tpu_custom_call.1} parent=1 // pred_check
      _
    $region31: #{tpu_custom_call.1} parent=1 // pred_check_branch
      %60 = sbr.rel (0) target = $region33
    $region32: #{tpu_custom_call.1} parent=1 // pred_region
      %61 = dma.done [#allocation6], 512
    $region33: #{tpu_custom_call.1} parent=1 // pred_fallthru
      _
    %v62 = vld [vmem:[#allocation2] sm:$0xff]
    %v63 = vld [vmem:[#allocation2 + $0x8] sm:$0xff]
    %v64 = vld [vmem:[#allocation5] sm:$0xff]
    %v65 = vld [vmem:[#allocation5 + $0x8] sm:$0xff]
    %v66 = vld [vmem:[#allocation5 + $0x10] sm:$0xff]
    %v67 = vld [vmem:[#allocation5 + $0x18] sm:$0xff]
    %v68 = vld [vmem:[%s2] sm:$0x1]
    %v70 = vlaneseq
    %v71 = vshrl.u32 %v70, 7
    %v72 = vsub.s32 0, %v71
    %v73 = vrot.slane %v68, %v72
    %vm75 = vcmask 261120
    %v77 = vsel %vm75, %v62, 0
    %v80 = vsel %vm75, %v63, 0
    %82 = vmatprep.subr.mxu0 0.0
    %83 = vmatpush1.msra.mxu0 0.0
    %84 = vmatprep.subr.mxu0 0.0
    %85 = vmatpush1.msra.mxu0 0.0
    %86 = vmatprep.subr.mxu0 0.0
    %87 = vmatpush1.msra.mxu0 0.0
    %88 = vmatprep.subr.mxu0 0.0
    %89 = vmatpush1.msra.mxu0 0.0
    %90 = vmatprep.subr.mxu0 0.0
    %91 = vmatpush1.msra.mxu0 0.0
    %92 = vmatprep.subr.mxu0 0.0
    %93 = vmatpush1.msra.mxu0 0.0
    %94 = vmatprep.subr.mxu0 0.0
    %95 = vmatpush1.msra.mxu0 0.0
    %96 = vmatprep.subr.mxu0 0.0
    %97 = vmatpush1.msra.mxu0 0.0
    %98 = vmatprep.subr.mxu0 0.0
    %99 = vmatpush1.msra.mxu0 0.0
    %100 = vmatprep.subr.mxu0 0.0
    %101 = vmatpush1.msra.mxu0 0.0
    %102 = vmatprep.subr.mxu0 0.0
    %103 = vmatpush1.msra.mxu0 0.0
    %104 = vmatprep.subr.mxu0 0.0
    %105 = vmatpush1.msra.mxu0 0.0
    %106 = vmatprep.subr.mxu0 0.0
    %107 = vmatpush1.msra.mxu0 %v67
    %108 = vmatprep.subr.mxu0 0.0
    %109 = vmatpush1.msra.mxu0 %v66
    %110 = vmatprep.subr.mxu0 0.0
    %111 = vmatpush1.msra.mxu0 %v65
    %112 = vmatprep.subr.mxu0 0.0
    %113 = vmatpush1.msra.mxu0 %v64
    %114 = vmatprep.subr.mxu0 0.0
    %115 = vmatpush2.msra.mxu0 0.0
    %116 = vmatprep.subr.mxu0 0.0
    %117 = vmatpush2.msra.mxu0 0.0
    %118 = vmatprep.subr.mxu0 0.0
    %119 = vmatpush2.msra.mxu0 0.0
    %120 = vmatprep.subr.mxu0 0.0
    %121 = vmatpush2.msra.mxu0 0.0
    %122 = vmatprep.subr.mxu0 0.0
    %123 = vmatpush2.msra.mxu0 0.0
    %124 = vmatprep.subr.mxu0 0.0
    %125 = vmatpush2.msra.mxu0 0.0
    %126 = vmatprep.subr.mxu0 0.0
    %127 = vmatpush2.msra.mxu0 0.0
    %128 = vmatprep.subr.mxu0 0.0
    %129 = vmatpush2.msra.mxu0 0.0
    %130 = vmatprep.subr.mxu0 0.0
    %131 = vmatpush2.msra.mxu0 0.0
    %132 = vmatprep.subr.mxu0 0.0
    %133 = vmatpush2.msra.mxu0 0.0
    %134 = vmatprep.subr.mxu0 0.0
    %135 = vmatpush2.msra.mxu0 0.0
    %136 = vmatprep.subr.mxu0 0.0
    %137 = vmatpush2.msra.mxu0 0.0
    %138 = vmatprep.subr.mxu0 0.0
    %139 = vmatpush2.msra.mxu0 0.0
    %140 = vmatprep.subr.mxu0 0.0
    %141 = vmatpush2.msra.mxu0 0.0
    %142 = vmatprep.subr.mxu0 0.0
    %143 = vmatpush2.msra.mxu0 0.0
    %144 = vmatprep.subr.mxu0 0.0
    %145 = vmatpush2.msra.mxu0 0.0
    %146 = vmatprep.mubr.f32.mxu0 0.0
    %147 = vmatmul.mubr.f32.gmra.mxu0 %v77
    %v148 = vpop.f32.mrf.mxu0
    %v149 = vadd.f32 %v73, %v148
    %v150 = vpop.f32.mrf.mxu0
    %151 = vmatprep.mubr.f32.mxu0 0.0
    %152 = vmatmul.mubr.f32.gmra.mxu0 %v80
    %v153 = vpop.f32.mrf.mxu0
    %v154 = vadd.f32 %v73, %v153
    %v155 = vpop.f32.mrf.mxu0
    %156 = vdwg.mxu0
    %158 = vrot.lane.b32.xlu0 %v149, 96
    %v159 = vpop.permute.xlu0 %158
    %vm160 = vcmask 130048
    %v161 = vsel %vm160, %v149, 0
    %v163 = vsel %vm160, %v159, 0
    %165 = vmatprep.subr.mxu0 0.0
    %166 = vmatpush1.xpose.msra.mxu0 0.0
    %167 = vmatprep.subr.mxu0 0.0
    %168 = vmatpush1.xpose.msra.mxu0 0.0
    %169 = vmatprep.subr.mxu0 0.0
    %170 = vmatpush1.xpose.msra.mxu0 0.0
    %171 = vmatprep.subr.mxu0 0.0
    %172 = vmatpush1.xpose.msra.mxu0 0.0
    %173 = vmatprep.subr.mxu0 0.0
    %174 = vmatpush1.xpose.msra.mxu0 0.0
    %175 = vmatprep.subr.mxu0 0.0
    %176 = vmatpush1.xpose.msra.mxu0 0.0
    %177 = vmatprep.subr.mxu0 0.0
    %178 = vmatpush1.xpose.msra.mxu0 0.0
    %179 = vmatprep.subr.mxu0 0.0
    %180 = vmatpush1.xpose.msra.mxu0 0.0
    %181 = vmatprep.subr.mxu0 0.0
    %182 = vmatpush1.xpose.msra.mxu0 0.0
    %183 = vmatprep.subr.mxu0 0.0
    %184 = vmatpush1.xpose.msra.mxu0 0.0
    %185 = vmatprep.subr.mxu0 0.0
    %186 = vmatpush1.xpose.msra.mxu0 0.0
    %187 = vmatprep.subr.mxu0 0.0
    %188 = vmatpush1.xpose.msra.mxu0 0.0
    %189 = vmatprep.subr.mxu0 0.0
    %190 = vmatpush1.xpose.msra.mxu0 0.0
    %191 = vmatprep.subr.mxu0 0.0
    %192 = vmatpush1.xpose.msra.mxu0 0.0
    %193 = vmatprep.subr.mxu0 0.0
    %194 = vmatpush1.xpose.msra.mxu0 0.0
    %195 = vmatprep.subr.mxu0 0.0
    %196 = vmatpush1.xpose.msra.mxu0 %v163
    %197 = vmatprep.subr.mxu0 0.0
    %198 = vmatpush2.xpose.msra.mxu0 0.0
    %199 = vmatprep.subr.mxu0 0.0
    %200 = vmatpush2.xpose.msra.mxu0 0.0
    %201 = vmatprep.subr.mxu0 0.0
    %202 = vmatpush2.xpose.msra.mxu0 0.0
    %203 = vmatprep.subr.mxu0 0.0
    %204 = vmatpush2.xpose.msra.mxu0 0.0
    %205 = vmatprep.subr.mxu0 0.0
    %206 = vmatpush2.xpose.msra.mxu0 0.0
    %207 = vmatprep.subr.mxu0 0.0
    %208 = vmatpush2.xpose.msra.mxu0 0.0
    %209 = vmatprep.subr.mxu0 0.0
    %210 = vmatpush2.xpose.msra.mxu0 0.0
    %211 = vmatprep.subr.mxu0 0.0
    %212 = vmatpush2.xpose.msra.mxu0 0.0
    %213 = vmatprep.subr.mxu0 0.0
    %214 = vmatpush2.xpose.msra.mxu0 0.0
    %215 = vmatprep.subr.mxu0 0.0
    %216 = vmatpush2.xpose.msra.mxu0 0.0
    %217 = vmatprep.subr.mxu0 0.0
    %218 = vmatpush2.xpose.msra.mxu0 0.0
    %219 = vmatprep.subr.mxu0 0.0
    %220 = vmatpush2.xpose.msra.mxu0 0.0
    %221 = vmatprep.subr.mxu0 0.0
    %222 = vmatpush2.xpose.msra.mxu0 0.0
    %223 = vmatprep.subr.mxu0 0.0
    %224 = vmatpush2.xpose.msra.mxu0 0.0
    %225 = vmatprep.subr.mxu0 0.0
    %226 = vmatpush2.xpose.msra.mxu0 0.0
    %227 = vmatprep.subr.mxu0 0.0
    %228 = vmatpush2.xpose.msra.mxu0 0.0
    %229 = vmatprep.mubr.f32.mxu0 0.0
    %230 = vmatmul.mubr.f32.gmra.mxu0 %v161
    %v231 = vpop.f32.mrf.mxu0
    %v232 = vadd.f32 0.0, %v231
    %v233 = vpop.f32.mrf.mxu0
    %234 = vdwg.mxu0
    %236 = vrot.lane.b32.xlu0 %v154, 96
    %v237 = vpop.permute.xlu0 %236
    %v238 = vsel %vm160, %v154, 0
    %v240 = vsel %vm160, %v237, 0
    %242 = vmatprep.subr.mxu0 0.0
    %243 = vmatpush1.xpose.msra.mxu0 0.0
    %244 = vmatprep.subr.mxu0 0.0
    %245 = vmatpush1.xpose.msra.mxu0 0.0
    %246 = vmatprep.subr.mxu0 0.0
    %247 = vmatpush1.xpose.msra.mxu0 0.0
    %248 = vmatprep.subr.mxu0 0.0
    %249 = vmatpush1.xpose.msra.mxu0 0.0
    %250 = vmatprep.subr.mxu0 0.0
    %251 = vmatpush1.xpose.msra.mxu0 0.0
    %252 = vmatprep.subr.mxu0 0.0
    %253 = vmatpush1.xpose.msra.mxu0 0.0
    %254 = vmatprep.subr.mxu0 0.0
    %255 = vmatpush1.xpose.msra.mxu0 0.0
    %256 = vmatprep.subr.mxu0 0.0
    %257 = vmatpush1.xpose.msra.mxu0 0.0
    %258 = vmatprep.subr.mxu0 0.0
    %259 = vmatpush1.xpose.msra.mxu0 0.0
    %260 = vmatprep.subr.mxu0 0.0
    %261 = vmatpush1.xpose.msra.mxu0 0.0
    %262 = vmatprep.subr.mxu0 0.0
    %263 = vmatpush1.xpose.msra.mxu0 0.0
    %264 = vmatprep.subr.mxu0 0.0
    %265 = vmatpush1.xpose.msra.mxu0 0.0
    %266 = vmatprep.subr.mxu0 0.0
    %267 = vmatpush1.xpose.msra.mxu0 0.0
    %268 = vmatprep.subr.mxu0 0.0
    %269 = vmatpush1.xpose.msra.mxu0 0.0
    %270 = vmatprep.subr.mxu0 0.0
    %271 = vmatpush1.xpose.msra.mxu0 0.0
    %272 = vmatprep.subr.mxu0 0.0
    %273 = vmatpush1.xpose.msra.mxu0 %v240
    %274 = vmatprep.subr.mxu0 0.0
    %275 = vmatpush2.xpose.msra.mxu0 0.0
    %276 = vmatprep.subr.mxu0 0.0
    %277 = vmatpush2.xpose.msra.mxu0 0.0
    %278 = vmatprep.subr.mxu0 0.0
    %279 = vmatpush2.xpose.msra.mxu0 0.0
    %280 = vmatprep.subr.mxu0 0.0
    %281 = vmatpush2.xpose.msra.mxu0 0.0
    %282 = vmatprep.subr.mxu0 0.0
    %283 = vmatpush2.xpose.msra.mxu0 0.0
    %284 = vmatprep.subr.mxu0 0.0
    %285 = vmatpush2.xpose.msra.mxu0 0.0
    %286 = vmatprep.subr.mxu0 0.0
    %287 = vmatpush2.xpose.msra.mxu0 0.0
    %288 = vmatprep.subr.mxu0 0.0
    %289 = vmatpush2.xpose.msra.mxu0 0.0
    %290 = vmatprep.subr.mxu0 0.0
    %291 = vmatpush2.xpose.msra.mxu0 0.0
    %292 = vmatprep.subr.mxu0 0.0
    %293 = vmatpush2.xpose.msra.mxu0 0.0
    %294 = vmatprep.subr.mxu0 0.0
    %295 = vmatpush2.xpose.msra.mxu0 0.0
    %296 = vmatprep.subr.mxu0 0.0
    %297 = vmatpush2.xpose.msra.mxu0 0.0
    %298 = vmatprep.subr.mxu0 0.0
    %299 = vmatpush2.xpose.msra.mxu0 0.0
    %300 = vmatprep.subr.mxu0 0.0
    %301 = vmatpush2.xpose.msra.mxu0 0.0
    %302 = vmatprep.subr.mxu0 0.0
    %303 = vmatpush2.xpose.msra.mxu0 0.0
    %304 = vmatprep.subr.mxu0 0.0
    %305 = vmatpush2.xpose.msra.mxu0 0.0
    %306 = vmatprep.mubr.f32.mxu0 0.0
    %307 = vmatmul.mubr.f32.gmra.mxu0 %v238
    %v308 = vpop.f32.mrf.mxu0
    %v309 = vadd.f32 0.0, %v308
    %v310 = vpop.f32.mrf.mxu0
    %311 = vdwg.mxu0
    %vm312 = vcmask 64512
    %v313 = vsel %vm312, %v232, -inf
    %314 = vmax.xlane.f32.xlu0 %v313
    %v315 = vpop.xlane.xlu0 %314
    %v316 = vsel %vm312, %v309, -inf
    %317 = vmax.xlane.f32.xlu0 %v316
    %v318 = vpop.xlane.xlu0 %317
    %v319 = vsub.f32 %v232, %v315
    %v320 = vsub.f32 %v309, %v318
    %v321 = vmul.f32 %v319, 1.442695
    %v322 = vpow.pop %v321
    %v323 = vmul.f32 %v320, 1.442695
    %v324 = vpow.pop %v323
    %v325 = vsel %vm312, %v322, 0.0
    %326 = vadd.xlane.f32.xlu0 %v325
    %v327 = vpop.xlane.xlu0 %326
    %v328 = vsel %vm312, %v324, 0.0
    %329 = vadd.xlane.f32.xlu0 %v328
    %v330 = vpop.xlane.xlu0 %329
    %v331 = vrcp.pop %v327
    %v332 = vrcp.pop %v330
    %v333 = vmul.f32 %v322, %v331
    %v334 = vmul.f32 %v324, %v332
    %335 = vrot.lane.b32.xlu0 %v149, 64
    %v336 = vpop.permute.xlu0 %335
    %v339 = vsel %vm312, %v333, 0
    %341 = vmatprep.subr.mxu0 0.0
    %342 = vmatpush1.msra.mxu0 0.0
    %343 = vmatprep.subr.mxu0 0.0
    %344 = vmatpush1.msra.mxu0 0.0
    %345 = vmatprep.subr.mxu0 0.0
    %346 = vmatpush1.msra.mxu0 0.0
    %347 = vmatprep.subr.mxu0 0.0
    %348 = vmatpush1.msra.mxu0 0.0
    %349 = vmatprep.subr.mxu0 0.0
    %350 = vmatpush1.msra.mxu0 0.0
    %351 = vmatprep.subr.mxu0 0.0
    %352 = vmatpush1.msra.mxu0 0.0
    %353 = vmatprep.subr.mxu0 0.0
    %354 = vmatpush1.msra.mxu0 0.0
    %355 = vmatprep.subr.mxu0 0.0
    %356 = vmatpush1.msra.mxu0 0.0
    %357 = vmatprep.subr.mxu0 0.0
    %358 = vmatpush1.msra.mxu0 0.0
    %359 = vmatprep.subr.mxu0 0.0
    %360 = vmatpush1.msra.mxu0 0.0
    %361 = vmatprep.subr.mxu0 0.0
    %362 = vmatpush1.msra.mxu0 0.0
    %363 = vmatprep.subr.mxu0 0.0
    %364 = vmatpush1.msra.mxu0 0.0
    %365 = vmatprep.subr.mxu0 0.0
    %366 = vmatpush1.msra.mxu0 0.0
    %367 = vmatprep.subr.mxu0 0.0
    %368 = vmatpush1.msra.mxu0 0.0
    %369 = vmatprep.subr.mxu0 0.0
    %370 = vmatpush1.msra.mxu0 0.0
    %371 = vmatprep.subr.mxu0 0.0
    %372 = vmatpush1.msra.mxu0 %v336
    %373 = vmatprep.subr.mxu0 0.0
    %374 = vmatpush2.msra.mxu0 0.0
    %375 = vmatprep.subr.mxu0 0.0
    %376 = vmatpush2.msra.mxu0 0.0
    %377 = vmatprep.subr.mxu0 0.0
    %378 = vmatpush2.msra.mxu0 0.0
    %379 = vmatprep.subr.mxu0 0.0
    %380 = vmatpush2.msra.mxu0 0.0
    %381 = vmatprep.subr.mxu0 0.0
    %382 = vmatpush2.msra.mxu0 0.0
    %383 = vmatprep.subr.mxu0 0.0
    %384 = vmatpush2.msra.mxu0 0.0
    %385 = vmatprep.subr.mxu0 0.0
    %386 = vmatpush2.msra.mxu0 0.0
    %387 = vmatprep.subr.mxu0 0.0
    %388 = vmatpush2.msra.mxu0 0.0
    %389 = vmatprep.subr.mxu0 0.0
    %390 = vmatpush2.msra.mxu0 0.0
    %391 = vmatprep.subr.mxu0 0.0
    %392 = vmatpush2.msra.mxu0 0.0
    %393 = vmatprep.subr.mxu0 0.0
    %394 = vmatpush2.msra.mxu0 0.0
    %395 = vmatprep.subr.mxu0 0.0
    %396 = vmatpush2.msra.mxu0 0.0
    %397 = vmatprep.subr.mxu0 0.0
    %398 = vmatpush2.msra.mxu0 0.0
    %399 = vmatprep.subr.mxu0 0.0
    %400 = vmatpush2.msra.mxu0 0.0
    %401 = vmatprep.subr.mxu0 0.0
    %402 = vmatpush2.msra.mxu0 0.0
    %403 = vmatprep.subr.mxu0 0.0
    %404 = vmatpush2.msra.mxu0 0.0
    %405 = vmatprep.mubr.f32.mxu0 0.0
    %406 = vmatmul.mubr.f32.gmra.mxu0 %v339
    %v407 = vpop.f32.mrf.mxu0
    %v408 = vadd.f32 0.0, %v407
    %v409 = vpop.f32.mrf.mxu0
    %410 = vdwg.mxu0
    %411 = vrot.lane.b32.xlu0 %v154, 64
    %v412 = vpop.permute.xlu0 %411
    %v415 = vsel %vm312, %v334, 0
    %417 = vmatprep.subr.mxu0 0.0
    %418 = vmatpush1.msra.mxu0 0.0
    %419 = vmatprep.subr.mxu0 0.0
    %420 = vmatpush1.msra.mxu0 0.0
    %421 = vmatprep.subr.mxu0 0.0
    %422 = vmatpush1.msra.mxu0 0.0
    %423 = vmatprep.subr.mxu0 0.0
    %424 = vmatpush1.msra.mxu0 0.0
    %425 = vmatprep.subr.mxu0 0.0
    %426 = vmatpush1.msra.mxu0 0.0
    %427 = vmatprep.subr.mxu0 0.0
    %428 = vmatpush1.msra.mxu0 0.0
    %429 = vmatprep.subr.mxu0 0.0
    %430 = vmatpush1.msra.mxu0 0.0
    %431 = vmatprep.subr.mxu0 0.0
    %432 = vmatpush1.msra.mxu0 0.0
    %433 = vmatprep.subr.mxu0 0.0
    %434 = vmatpush1.msra.mxu0 0.0
    %435 = vmatprep.subr.mxu0 0.0
    %436 = vmatpush1.msra.mxu0 0.0
    %437 = vmatprep.subr.mxu0 0.0
    %438 = vmatpush1.msra.mxu0 0.0
    %439 = vmatprep.subr.mxu0 0.0
    %440 = vmatpush1.msra.mxu0 0.0
    %441 = vmatprep.subr.mxu0 0.0
    %442 = vmatpush1.msra.mxu0 0.0
    %443 = vmatprep.subr.mxu0 0.0
    %444 = vmatpush1.msra.mxu0 0.0
    %445 = vmatprep.subr.mxu0 0.0
    %446 = vmatpush1.msra.mxu0 0.0
    %447 = vmatprep.subr.mxu0 0.0
    %448 = vmatpush1.msra.mxu0 %v412
    %449 = vmatprep.subr.mxu0 0.0
    %450 = vmatpush2.msra.mxu0 0.0
    %451 = vmatprep.subr.mxu0 0.0
    %452 = vmatpush2.msra.mxu0 0.0
    %453 = vmatprep.subr.mxu0 0.0
    %454 = vmatpush2.msra.mxu0 0.0
    %455 = vmatprep.subr.mxu0 0.0
    %456 = vmatpush2.msra.mxu0 0.0
    %457 = vmatprep.subr.mxu0 0.0
    %458 = vmatpush2.msra.mxu0 0.0
    %459 = vmatprep.subr.mxu0 0.0
    %460 = vmatpush2.msra.mxu0 0.0
    %461 = vmatprep.subr.mxu0 0.0
    %462 = vmatpush2.msra.mxu0 0.0
    %463 = vmatprep.subr.mxu0 0.0
    %464 = vmatpush2.msra.mxu0 0.0
    %465 = vmatprep.subr.mxu0 0.0
    %466 = vmatpush2.msra.mxu0 0.0
    %467 = vmatprep.subr.mxu0 0.0
    %468 = vmatpush2.msra.mxu0 0.0
    %469 = vmatprep.subr.mxu0 0.0
    %470 = vmatpush2.msra.mxu0 0.0
    %471 = vmatprep.subr.mxu0 0.0
    %472 = vmatpush2.msra.mxu0 0.0
    %473 = vmatprep.subr.mxu0 0.0
    %474 = vmatpush2.msra.mxu0 0.0
    %475 = vmatprep.subr.mxu0 0.0
    %476 = vmatpush2.msra.mxu0 0.0
    %477 = vmatprep.subr.mxu0 0.0
    %478 = vmatpush2.msra.mxu0 0.0
    %479 = vmatprep.subr.mxu0 0.0
    %480 = vmatpush2.msra.mxu0 0.0
    %481 = vmatprep.mubr.f32.mxu0 0.0
    %482 = vmatmul.mubr.f32.gmra.mxu0 %v415
    %v483 = vpop.f32.mrf.mxu0
    %v484 = vadd.f32 0.0, %v483
    %v485 = vpop.f32.mrf.mxu0
    %486 = vdwg.mxu0
    %487 = vrot.lane.b32.xlu0 %v149, 112
    %v488 = vpop.permute.xlu0 %487
    %489 = vrot.lane.b32.xlu0 %v149, 80
    %v490 = vpop.permute.xlu0 %489
    %v491 = vsel %vm160, %v488, 0
    %v493 = vsel %vm160, %v490, 0
    %495 = vmatprep.subr.mxu0 0.0
    %496 = vmatpush1.xpose.msra.mxu0 0.0
    %497 = vmatprep.subr.mxu0 0.0
    %498 = vmatpush1.xpose.msra.mxu0 0.0
    %499 = vmatprep.subr.mxu0 0.0
    %500 = vmatpush1.xpose.msra.mxu0 0.0
    %501 = vmatprep.subr.mxu0 0.0
    %502 = vmatpush1.xpose.msra.mxu0 0.0
    %503 = vmatprep.subr.mxu0 0.0
    %504 = vmatpush1.xpose.msra.mxu0 0.0
    %505 = vmatprep.subr.mxu0 0.0
    %506 = vmatpush1.xpose.msra.mxu0 0.0
    %507 = vmatprep.subr.mxu0 0.0
    %508 = vmatpush1.xpose.msra.mxu0 0.0
    %509 = vmatprep.subr.mxu0 0.0
    %510 = vmatpush1.xpose.msra.mxu0 0.0
    %511 = vmatprep.subr.mxu0 0.0
    %512 = vmatpush1.xpose.msra.mxu0 0.0
    %513 = vmatprep.subr.mxu0 0.0
    %514 = vmatpush1.xpose.msra.mxu0 0.0
    %515 = vmatprep.subr.mxu0 0.0
    %516 = vmatpush1.xpose.msra.mxu0 0.0
    %517 = vmatprep.subr.mxu0 0.0
    %518 = vmatpush1.xpose.msra.mxu0 0.0
    %519 = vmatprep.subr.mxu0 0.0
    %520 = vmatpush1.xpose.msra.mxu0 0.0
    %521 = vmatprep.subr.mxu0 0.0
    %522 = vmatpush1.xpose.msra.mxu0 0.0
    %523 = vmatprep.subr.mxu0 0.0
    %524 = vmatpush1.xpose.msra.mxu0 0.0
    %525 = vmatprep.subr.mxu0 0.0
    %526 = vmatpush1.xpose.msra.mxu0 %v493
    %527 = vmatprep.subr.mxu0 0.0
    %528 = vmatpush2.xpose.msra.mxu0 0.0
    %529 = vmatprep.subr.mxu0 0.0
    %530 = vmatpush2.xpose.msra.mxu0 0.0
    %531 = vmatprep.subr.mxu0 0.0
    %532 = vmatpush2.xpose.msra.mxu0 0.0
    %533 = vmatprep.subr.mxu0 0.0
    %534 = vmatpush2.xpose.msra.mxu0 0.0
    %535 = vmatprep.subr.mxu0 0.0
    %536 = vmatpush2.xpose.msra.mxu0 0.0
    %537 = vmatprep.subr.mxu0 0.0
    %538 = vmatpush2.xpose.msra.mxu0 0.0
    %539 = vmatprep.subr.mxu0 0.0
    %540 = vmatpush2.xpose.msra.mxu0 0.0
    %541 = vmatprep.subr.mxu0 0.0
    %542 = vmatpush2.xpose.msra.mxu0 0.0
    %543 = vmatprep.subr.mxu0 0.0
    %544 = vmatpush2.xpose.msra.mxu0 0.0
    %545 = vmatprep.subr.mxu0 0.0
    %546 = vmatpush2.xpose.msra.mxu0 0.0
    %547 = vmatprep.subr.mxu0 0.0
    %548 = vmatpush2.xpose.msra.mxu0 0.0
    %549 = vmatprep.subr.mxu0 0.0
    %550 = vmatpush2.xpose.msra.mxu0 0.0
    %551 = vmatprep.subr.mxu0 0.0
    %552 = vmatpush2.xpose.msra.mxu0 0.0
    %553 = vmatprep.subr.mxu0 0.0
    %554 = vmatpush2.xpose.msra.mxu0 0.0
    %555 = vmatprep.subr.mxu0 0.0
    %556 = vmatpush2.xpose.msra.mxu0 0.0
    %557 = vmatprep.subr.mxu0 0.0
    %558 = vmatpush2.xpose.msra.mxu0 0.0
    %559 = vmatprep.mubr.f32.mxu0 0.0
    %560 = vmatmul.mubr.f32.gmra.mxu0 %v491
    %v561 = vpop.f32.mrf.mxu0
    %v562 = vadd.f32 0.0, %v561
    %v563 = vpop.f32.mrf.mxu0
    %564 = vdwg.mxu0
    %565 = vrot.lane.b32.xlu0 %v154, 112
    %v566 = vpop.permute.xlu0 %565
    %567 = vrot.lane.b32.xlu0 %v154, 80
    %v568 = vpop.permute.xlu0 %567
    %v569 = vsel %vm160, %v566, 0
    %v571 = vsel %vm160, %v568, 0
    %573 = vmatprep.subr.mxu0 0.0
    %574 = vmatpush1.xpose.msra.mxu0 0.0
    %575 = vmatprep.subr.mxu0 0.0
    %576 = vmatpush1.xpose.msra.mxu0 0.0
    %577 = vmatprep.subr.mxu0 0.0
    %578 = vmatpush1.xpose.msra.mxu0 0.0
    %579 = vmatprep.subr.mxu0 0.0
    %580 = vmatpush1.xpose.msra.mxu0 0.0
    %581 = vmatprep.subr.mxu0 0.0
    %582 = vmatpush1.xpose.msra.mxu0 0.0
    %583 = vmatprep.subr.mxu0 0.0
    %584 = vmatpush1.xpose.msra.mxu0 0.0
    %585 = vmatprep.subr.mxu0 0.0
    %586 = vmatpush1.xpose.msra.mxu0 0.0
    %587 = vmatprep.subr.mxu0 0.0
    %588 = vmatpush1.xpose.msra.mxu0 0.0
    %589 = vmatprep.subr.mxu0 0.0
    %590 = vmatpush1.xpose.msra.mxu0 0.0
    %591 = vmatprep.subr.mxu0 0.0
    %592 = vmatpush1.xpose.msra.mxu0 0.0
    %593 = vmatprep.subr.mxu0 0.0
    %594 = vmatpush1.xpose.msra.mxu0 0.0
    %595 = vmatprep.subr.mxu0 0.0
    %596 = vmatpush1.xpose.msra.mxu0 0.0
    %597 = vmatprep.subr.mxu0 0.0
    %598 = vmatpush1.xpose.msra.mxu0 0.0
    %599 = vmatprep.subr.mxu0 0.0
    %600 = vmatpush1.xpose.msra.mxu0 0.0
    %601 = vmatprep.subr.mxu0 0.0
    %602 = vmatpush1.xpose.msra.mxu0 0.0
    %603 = vmatprep.subr.mxu0 0.0
    %604 = vmatpush1.xpose.msra.mxu0 %v571
    %605 = vmatprep.subr.mxu0 0.0
    %606 = vmatpush2.xpose.msra.mxu0 0.0
    %607 = vmatprep.subr.mxu0 0.0
    %608 = vmatpush2.xpose.msra.mxu0 0.0
    %609 = vmatprep.subr.mxu0 0.0
    %610 = vmatpush2.xpose.msra.mxu0 0.0
    %611 = vmatprep.subr.mxu0 0.0
    %612 = vmatpush2.xpose.msra.mxu0 0.0
    %613 = vmatprep.subr.mxu0 0.0
    %614 = vmatpush2.xpose.msra.mxu0 0.0
    %615 = vmatprep.subr.mxu0 0.0
    %616 = vmatpush2.xpose.msra.mxu0 0.0
    %617 = vmatprep.subr.mxu0 0.0
    %618 = vmatpush2.xpose.msra.mxu0 0.0
    %619 = vmatprep.subr.mxu0 0.0
    %620 = vmatpush2.xpose.msra.mxu0 0.0
    %621 = vmatprep.subr.mxu0 0.0
    %622 = vmatpush2.xpose.msra.mxu0 0.0
    %623 = vmatprep.subr.mxu0 0.0
    %624 = vmatpush2.xpose.msra.mxu0 0.0
    %625 = vmatprep.subr.mxu0 0.0
    %626 = vmatpush2.xpose.msra.mxu0 0.0
    %627 = vmatprep.subr.mxu0 0.0
    %628 = vmatpush2.xpose.msra.mxu0 0.0
    %629 = vmatprep.subr.mxu0 0.0
    %630 = vmatpush2.xpose.msra.mxu0 0.0
    %631 = vmatprep.subr.mxu0 0.0
    %632 = vmatpush2.xpose.msra.mxu0 0.0
    %633 = vmatprep.subr.mxu0 0.0
    %634 = vmatpush2.xpose.msra.mxu0 0.0
    %635 = vmatprep.subr.mxu0 0.0
    %636 = vmatpush2.xpose.msra.mxu0 0.0
    %637 = vmatprep.mubr.f32.mxu0 0.0
    %638 = vmatmul.mubr.f32.gmra.mxu0 %v569
    %v639 = vpop.f32.mrf.mxu0
    %v640 = vadd.f32 0.0, %v639
    %v641 = vpop.f32.mrf.mxu0
    %642 = vdwg.mxu0
    %v643 = vsel %vm312, %v562, -inf
    %644 = vmax.xlane.f32.xlu0 %v643
    %v645 = vpop.xlane.xlu0 %644
    %v646 = vsel %vm312, %v640, -inf
    %647 = vmax.xlane.f32.xlu0 %v646
    %v648 = vpop.xlane.xlu0 %647
    %v649 = vsub.f32 %v562, %v645
    %v650 = vsub.f32 %v640, %v648
    %v651 = vmul.f32 %v649, 1.442695
    %v652 = vpow.pop %v651
    %v653 = vmul.f32 %v650, 1.442695
    %v654 = vpow.pop %v653
    %v655 = vsel %vm312, %v652, 0.0
    %656 = vadd.xlane.f32.xlu0 %v655
    %v657 = vpop.xlane.xlu0 %656
    %v658 = vsel %vm312, %v654, 0.0
    %659 = vadd.xlane.f32.xlu0 %v658
    %v660 = vpop.xlane.xlu0 %659
    %v661 = vrcp.pop %v657
    %v662 = vrcp.pop %v660
    %v663 = vmul.f32 %v652, %v661
    %v664 = vmul.f32 %v654, %v662
    %665 = vrot.lane.b32.xlu0 %v149, 48
    %v666 = vpop.permute.xlu0 %665
    %v669 = vsel %vm312, %v663, 0
    %671 = vmatprep.subr.mxu0 0.0
    %672 = vmatpush1.msra.mxu0 0.0
    %673 = vmatprep.subr.mxu0 0.0
    %674 = vmatpush1.msra.mxu0 0.0
    %675 = vmatprep.subr.mxu0 0.0
    %676 = vmatpush1.msra.mxu0 0.0
    %677 = vmatprep.subr.mxu0 0.0
    %678 = vmatpush1.msra.mxu0 0.0
    %679 = vmatprep.subr.mxu0 0.0
    %680 = vmatpush1.msra.mxu0 0.0
    %681 = vmatprep.subr.mxu0 0.0
    %682 = vmatpush1.msra.mxu0 0.0
    %683 = vmatprep.subr.mxu0 0.0
    %684 = vmatpush1.msra.mxu0 0.0
    %685 = vmatprep.subr.mxu0 0.0
    %686 = vmatpush1.msra.mxu0 0.0
    %687 = vmatprep.subr.mxu0 0.0
    %688 = vmatpush1.msra.mxu0 0.0
    %689 = vmatprep.subr.mxu0 0.0
    %690 = vmatpush1.msra.mxu0 0.0
    %691 = vmatprep.subr.mxu0 0.0
    %692 = vmatpush1.msra.mxu0 0.0
    %693 = vmatprep.subr.mxu0 0.0
    %694 = vmatpush1.msra.mxu0 0.0
    %695 = vmatprep.subr.mxu0 0.0
    %696 = vmatpush1.msra.mxu0 0.0
    %697 = vmatprep.subr.mxu0 0.0
    %698 = vmatpush1.msra.mxu0 0.0
    %699 = vmatprep.subr.mxu0 0.0
    %700 = vmatpush1.msra.mxu0 0.0
    %701 = vmatprep.subr.mxu0 0.0
    %702 = vmatpush1.msra.mxu0 %v666
    %703 = vmatprep.subr.mxu0 0.0
    %704 = vmatpush2.msra.mxu0 0.0
    %705 = vmatprep.subr.mxu0 0.0
    %706 = vmatpush2.msra.mxu0 0.0
    %707 = vmatprep.subr.mxu0 0.0
    %708 = vmatpush2.msra.mxu0 0.0
    %709 = vmatprep.subr.mxu0 0.0
    %710 = vmatpush2.msra.mxu0 0.0
    %711 = vmatprep.subr.mxu0 0.0
    %712 = vmatpush2.msra.mxu0 0.0
    %713 = vmatprep.subr.mxu0 0.0
    %714 = vmatpush2.msra.mxu0 0.0
    %715 = vmatprep.subr.mxu0 0.0
    %716 = vmatpush2.msra.mxu0 0.0
    %717 = vmatprep.subr.mxu0 0.0
    %718 = vmatpush2.msra.mxu0 0.0
    %719 = vmatprep.subr.mxu0 0.0
    %720 = vmatpush2.msra.mxu0 0.0
    %721 = vmatprep.subr.mxu0 0.0
    %722 = vmatpush2.msra.mxu0 0.0
    %723 = vmatprep.subr.mxu0 0.0
    %724 = vmatpush2.msra.mxu0 0.0
    %725 = vmatprep.subr.mxu0 0.0
    %726 = vmatpush2.msra.mxu0 0.0
    %727 = vmatprep.subr.mxu0 0.0
    %728 = vmatpush2.msra.mxu0 0.0
    %729 = vmatprep.subr.mxu0 0.0
    %730 = vmatpush2.msra.mxu0 0.0
    %731 = vmatprep.subr.mxu0 0.0
    %732 = vmatpush2.msra.mxu0 0.0
    %733 = vmatprep.subr.mxu0 0.0
    %734 = vmatpush2.msra.mxu0 0.0
    %735 = vmatprep.mubr.f32.mxu0 0.0
    %736 = vmatmul.mubr.f32.gmra.mxu0 %v669
    %v737 = vpop.f32.mrf.mxu0
    %v738 = vadd.f32 0.0, %v737
    %v739 = vpop.f32.mrf.mxu0
    %740 = vdwg.mxu0
    %741 = vrot.lane.b32.xlu0 %v154, 48
    %v742 = vpop.permute.xlu0 %741
    %v745 = vsel %vm312, %v664, 0
    %747 = vmatprep.subr.mxu0 0.0
    %748 = vmatpush1.msra.mxu0 0.0
    %749 = vmatprep.subr.mxu0 0.0
    %750 = vmatpush1.msra.mxu0 0.0
    %751 = vmatprep.subr.mxu0 0.0
    %752 = vmatpush1.msra.mxu0 0.0
    %753 = vmatprep.subr.mxu0 0.0
    %754 = vmatpush1.msra.mxu0 0.0
    %755 = vmatprep.subr.mxu0 0.0
    %756 = vmatpush1.msra.mxu0 0.0
    %757 = vmatprep.subr.mxu0 0.0
    %758 = vmatpush1.msra.mxu0 0.0
    %759 = vmatprep.subr.mxu0 0.0
    %760 = vmatpush1.msra.mxu0 0.0
    %761 = vmatprep.subr.mxu0 0.0
    %762 = vmatpush1.msra.mxu0 0.0
    %763 = vmatprep.subr.mxu0 0.0
    %764 = vmatpush1.msra.mxu0 0.0
    %765 = vmatprep.subr.mxu0 0.0
    %766 = vmatpush1.msra.mxu0 0.0
    %767 = vmatprep.subr.mxu0 0.0
    %768 = vmatpush1.msra.mxu0 0.0
    %769 = vmatprep.subr.mxu0 0.0
    %770 = vmatpush1.msra.mxu0 0.0
    %771 = vmatprep.subr.mxu0 0.0
    %772 = vmatpush1.msra.mxu0 0.0
    %773 = vmatprep.subr.mxu0 0.0
    %774 = vmatpush1.msra.mxu0 0.0
    %775 = vmatprep.subr.mxu0 0.0
    %776 = vmatpush1.msra.mxu0 0.0
    %777 = vmatprep.subr.mxu0 0.0
    %778 = vmatpush1.msra.mxu0 %v742
    %779 = vmatprep.subr.mxu0 0.0
    %780 = vmatpush2.msra.mxu0 0.0
    %781 = vmatprep.subr.mxu0 0.0
    %782 = vmatpush2.msra.mxu0 0.0
    %783 = vmatprep.subr.mxu0 0.0
    %784 = vmatpush2.msra.mxu0 0.0
    %785 = vmatprep.subr.mxu0 0.0
    %786 = vmatpush2.msra.mxu0 0.0
    %787 = vmatprep.subr.mxu0 0.0
    %788 = vmatpush2.msra.mxu0 0.0
    %789 = vmatprep.subr.mxu0 0.0
    %790 = vmatpush2.msra.mxu0 0.0
    %791 = vmatprep.subr.mxu0 0.0
    %792 = vmatpush2.msra.mxu0 0.0
    %793 = vmatprep.subr.mxu0 0.0
    %794 = vmatpush2.msra.mxu0 0.0
    %795 = vmatprep.subr.mxu0 0.0
    %796 = vmatpush2.msra.mxu0 0.0
    %797 = vmatprep.subr.mxu0 0.0
    %798 = vmatpush2.msra.mxu0 0.0
    %799 = vmatprep.subr.mxu0 0.0
    %800 = vmatpush2.msra.mxu0 0.0
    %801 = vmatprep.subr.mxu0 0.0
    %802 = vmatpush2.msra.mxu0 0.0
    %803 = vmatprep.subr.mxu0 0.0
    %804 = vmatpush2.msra.mxu0 0.0
    %805 = vmatprep.subr.mxu0 0.0
    %806 = vmatpush2.msra.mxu0 0.0
    %807 = vmatprep.subr.mxu0 0.0
    %808 = vmatpush2.msra.mxu0 0.0
    %809 = vmatprep.subr.mxu0 0.0
    %810 = vmatpush2.msra.mxu0 0.0
    %811 = vmatprep.mubr.f32.mxu0 0.0
    %812 = vmatmul.mubr.f32.gmra.mxu0 %v745
    %v813 = vpop.f32.mrf.mxu0
    %v814 = vadd.f32 0.0, %v813
    %v815 = vpop.f32.mrf.mxu0
    %816 = vdwg.mxu0
    %819 = vrot.lane.b32.xlu0 %v738, 16
    %v820 = vpop.permute.xlu0 %819
    %821 = vrot.lane.b32.xlu0 %v814, 16
    %v822 = vpop.permute.xlu0 %821
    %v825 = vsel %vm160, %v408, %v820
    %v826 = vsel %vm160, %v484, %v822
    %v827 = vld [vmem:[#allocation7] sm:$0xff]
    %v828 = vld [vmem:[#allocation7 + $0x8] sm:$0xff]
    %v829 = vld [vmem:[#allocation7 + $0x10] sm:$0xff]
    %v830 = vld [vmem:[#allocation7 + $0x18] sm:$0xff]
    %v831 = vld [vmem:[%s4] sm:$0x1]
    %v833 = vlaneseq
    %v834 = vshrl.u32 %v833, 7
    %v835 = vsub.s32 0, %v834
    %v836 = vrot.slane %v831, %v835
    %v839 = vsel %vm75, %v825, 0
    %v842 = vsel %vm75, %v826, 0
    %844 = vmatprep.subr.mxu0 0.0
    %845 = vmatpush1.msra.mxu0 0.0
    %846 = vmatprep.subr.mxu0 0.0
    %847 = vmatpush1.msra.mxu0 0.0
    %848 = vmatprep.subr.mxu0 0.0
    %849 = vmatpush1.msra.mxu0 0.0
    %850 = vmatprep.subr.mxu0 0.0
    %851 = vmatpush1.msra.mxu0 0.0
    %852 = vmatprep.subr.mxu0 0.0
    %853 = vmatpush1.msra.mxu0 0.0
    %854 = vmatprep.subr.mxu0 0.0
    %855 = vmatpush1.msra.mxu0 0.0
    %856 = vmatprep.subr.mxu0 0.0
    %857 = vmatpush1.msra.mxu0 0.0
    %858 = vmatprep.subr.mxu0 0.0
    %859 = vmatpush1.msra.mxu0 0.0
    %860 = vmatprep.subr.mxu0 0.0
    %861 = vmatpush1.msra.mxu0 0.0
    %862 = vmatprep.subr.mxu0 0.0
    %863 = vmatpush1.msra.mxu0 0.0
    %864 = vmatprep.subr.mxu0 0.0
    %865 = vmatpush1.msra.mxu0 0.0
    %866 = vmatprep.subr.mxu0 0.0
    %867 = vmatpush1.msra.mxu0 0.0
    %868 = vmatprep.subr.mxu0 0.0
    %869 = vmatpush1.msra.mxu0 %v830
    %870 = vmatprep.subr.mxu0 0.0
    %871 = vmatpush1.msra.mxu0 %v829
    %872 = vmatprep.subr.mxu0 0.0
    %873 = vmatpush1.msra.mxu0 %v828
    %874 = vmatprep.subr.mxu0 0.0
    %875 = vmatpush1.msra.mxu0 %v827
    %876 = vmatprep.subr.mxu0 0.0
    %877 = vmatpush2.msra.mxu0 0.0
    %878 = vmatprep.subr.mxu0 0.0
    %879 = vmatpush2.msra.mxu0 0.0
    %880 = vmatprep.subr.mxu0 0.0
    %881 = vmatpush2.msra.mxu0 0.0
    %882 = vmatprep.subr.mxu0 0.0
    %883 = vmatpush2.msra.mxu0 0.0
    %884 = vmatprep.subr.mxu0 0.0
    %885 = vmatpush2.msra.mxu0 0.0
    %886 = vmatprep.subr.mxu0 0.0
    %887 = vmatpush2.msra.mxu0 0.0
    %888 = vmatprep.subr.mxu0 0.0
    %889 = vmatpush2.msra.mxu0 0.0
    %890 = vmatprep.subr.mxu0 0.0
    %891 = vmatpush2.msra.mxu0 0.0
    %892 = vmatprep.subr.mxu0 0.0
    %893 = vmatpush2.msra.mxu0 0.0
    %894 = vmatprep.subr.mxu0 0.0
    %895 = vmatpush2.msra.mxu0 0.0
    %896 = vmatprep.subr.mxu0 0.0
    %897 = vmatpush2.msra.mxu0 0.0
    %898 = vmatprep.subr.mxu0 0.0
    %899 = vmatpush2.msra.mxu0 0.0
    %900 = vmatprep.subr.mxu0 0.0
    %901 = vmatpush2.msra.mxu0 0.0
    %902 = vmatprep.subr.mxu0 0.0
    %903 = vmatpush2.msra.mxu0 0.0
    %904 = vmatprep.subr.mxu0 0.0
    %905 = vmatpush2.msra.mxu0 0.0
    %906 = vmatprep.subr.mxu0 0.0
    %907 = vmatpush2.msra.mxu0 0.0
    %908 = vmatprep.mubr.f32.mxu0 0.0
    %909 = vmatmul.mubr.f32.gmra.mxu0 %v839
    %v910 = vpop.f32.mrf.mxu0
    %v911 = vadd.f32 %v836, %v910
    %v912 = vpop.f32.mrf.mxu0
    %913 = vmatprep.mubr.f32.mxu0 0.0
    %914 = vmatmul.mubr.f32.gmra.mxu0 %v842
    %v915 = vpop.f32.mrf.mxu0
    %v916 = vadd.f32 %v836, %v915
    %v917 = vpop.f32.mrf.mxu0
    %918 = vdwg.mxu0
    %919 = vst [vmem:[#allocation8] sm:$0xff] %v911
    %920 = vst [vmem:[#allocation8 + $0x8] sm:$0xff] %v916
    // Predicated region
    $region34: #{tpu_custom_call.1} parent=1 // pred_check
      _
    $region35: #{tpu_custom_call.1} parent=1 // pred_check_branch
      %922 = sbr.rel (0) target = $region37
    $region36: #{tpu_custom_call.1} parent=1 // pred_region
      %s924 = ssub.s32 256, 256
      %925 = vsyncadd [#allocation4], %s924
      %s926 = sshll.u32 [#allocation8], 4
      %s927 = int_to_ptr.vmem [resolvable:$true] %s926
      %932 = dma.vmem_to_hbm [thread:$0]  %s927, 256, %s5, [#allocation4], 128, 128, 8
    $region37: #{tpu_custom_call.1} parent=1 // pred_fallthru
      _
    // Predicated region
    $region38: #{tpu_custom_call.1} parent=1 // pred_check
      _
    $region39: #{tpu_custom_call.1} parent=1 // pred_check_branch
      %934 = sbr.rel (0) target = $region41
    $region40: #{tpu_custom_call.1} parent=1 // pred_region
      %935 = dma.done [#allocation4], 256
    $region41: #{tpu_custom_call.1} parent=1 // pred_fallthru
      _
    %936 = vsyncpa [#allocation3], 1
    %937 = vsyncpa [#allocation6], 1
    %938 = vsyncpa [#allocation4], 1

</llo_original>
